<compile_context>
chip_gen: v7x
topology: tpu7x:2x2x1
jax: 0.10.0
libtpu: 0.0.40
codegen_flags: <defaults>
</compile_context>

<pallas_src>
import jax
import jax.numpy as jnp
from jax.experimental import pallas as pl
from jax.experimental.pallas import tpu as pltpu


def _make_kernel(max_scale):
    def kernel(t_ref, a_ref, b_ref, sa_ref, sb_ref):
        # t is a scalar held in SMEM as a (1, 1) block.
        denom = t_ref[0, 0] + 1.0
        # Computed once per grid step; with Bt typically == batch_size the inner batch
        # axis has extent 1, so there is no redundant per-batch recompute.  When the
        # batch axis does have extent > 1 (both axes "parallel", so no cross-step
        # caching), this divide+clip on a (tm, N) tile hides under the 2x(Bt, tm, N)
        # HBM write of the step.
        sa = jnp.clip(1.0 - a_ref[...] / denom, -max_scale, max_scale)
        sb = jnp.clip(b_ref[...] / denom, -max_scale, max_scale)
        # Broadcast across the Bt batch slices of the output block: single compute,
        # lane-dense slab stores.
        sa_ref[...] = jnp.broadcast_to(sa[None, :, :], sa_ref.shape)
        sb_ref[...] = jnp.broadcast_to(sb[None, :, :], sb_ref.shape)

    return kernel


def _vmem_capacity_bytes():
    """Physical VMEM per core; falls back to the v7x value (the tightest) if unknown."""
    try:
        info = pltpu.get_tpu_info()
        cap = int(getattr(info, "vmem_capacity_bytes", 64 << 20))
        if cap <= 0:
            cap = 64 << 20
    except Exception:  # non-TPU / introspection unavailable
        cap = 64 << 20
    return cap


def _pick_tiles(batch_size, M_pad, N, scoped_limit_bytes):
    """Pick (Bt, tm).

    tm: multiple-of-8 divisor of M_pad with an input block of at most ~2 MiB.
    Bt: largest divisor of batch_size whose (Bt, tm, N) f32 output block keeps the
        total double-buffered footprint (2 outputs + 2 inputs, 2 buffers each) inside
        the scoped VMEM limit with headroom.
    """
    row_bytes = N * 4
    input_block_cap = 2 << 20

    tm_candidates = [d for d in range(M_pad, 0, -1) if M_pad % d == 0 and d % 8 == 0]
    tm = next((d for d in tm_candidates if d * row_bytes <= input_block_cap),
              tm_candidates[-1])

    input_footprint = 2 * 2 * tm * row_bytes                    # 2 inputs x 2 buffers
    margin = 8 << 20
    # Per-output-block budget: (scoped - margin - inputs) / (2 outputs x 2 buffers),
    # capped at 8 MiB (beyond that the DMA roofline plateau gives nothing back).
    out_block_cap = max((scoped_limit_bytes - margin - input_footprint) // 4,
                        tm * row_bytes)
    out_block_cap = min(out_block_cap, 8 << 20)

    Bt = 1
    for d in range(batch_size, 0, -1):
        if batch_size % d == 0 and d * tm * row_bytes <= max(out_block_cap, tm * row_bytes):
            Bt = d
            break
    return Bt, tm


def scaling_factor_compute(A, B, t, batch_size, max_scale=1.0):
    """Pallas TPU implementation of ScalingFactorCompute.forward.

    A, B: (M, N) float32
    t:    scalar float
    returns (scaling_factor_A, scaling_factor_B), each (batch_size, M, N) float32.
    """
    M, N = A.shape
    assert B.shape == (M, N)
    out_dtype = A.dtype
    t_arr = jnp.asarray(t, dtype=jnp.float32).reshape(1, 1)

    # Pad M to a multiple of 8 so row tiles satisfy the (8, 128) sublane rule without
    # ever being forced to tm == M (which can blow the VMEM budget for large odd M).
    M_pad = ((M + 7) // 8) * 8
    if M_pad != M:
        A_p = jnp.pad(A, ((0, M_pad - M), (0, 0)))
        B_p = jnp.pad(B, ((0, M_pad - M), (0, 0)))
    else:
        A_p, B_p = A, B

    vmem_cap = _vmem_capacity_bytes()
    scoped_limit = min(int(vmem_cap * 0.75), 96 << 20)  # 96 MiB on v5e/v6e, 48 MiB on v7x
    Bt, tm = _pick_tiles(batch_size, M_pad, N, scoped_limit)

    grid = (M_pad // tm, batch_size // Bt)  # row tiles OUTER, batch tiles INNER

    out_shape = (
        jax.ShapeDtypeStruct((batch_size, M_pad, N), out_dtype),
        jax.ShapeDtypeStruct((batch_size, M_pad, N), out_dtype),
    )

    in_specs = [
        # scalar t lives in SMEM; same block for every grid step.
        pl.BlockSpec((1, 1), lambda i, b: (0, 0),
                     memory_space=pltpu.MemorySpace.SMEM),
        # A/B block index depends only on the outer (row-tile) axis -> one HBM fetch
        # per row tile, reused across the inner batch axis.
        pl.BlockSpec((tm, N), lambda i, b: (i, 0)),
        pl.BlockSpec((tm, N), lambda i, b: (i, 0)),
    ]
    out_specs = (
        pl.BlockSpec((Bt, tm, N), lambda i, b: (b, i, 0)),
        pl.BlockSpec((Bt, tm, N), lambda i, b: (b, i, 0)),
    )

    fn = pl.pallas_call(
        _make_kernel(float(max_scale)),
        out_shape=out_shape,
        grid=grid,
        in_specs=in_specs,
        out_specs=out_specs,
        compiler_params=pltpu.CompilerParams(
            # No carried state between grid steps: both axes are legally parallel, so
            # v7x's two TensorCores share the work along either axis.
            dimension_semantics=("parallel", "parallel"),
            vmem_limit_bytes=scoped_limit,
        ),
    )
    sa, sb = fn(t_arr, A_p, B_p)
    if M_pad != M:
        sa = sa[:, :M, :]
        sb = sb[:, :M, :]
    return sa, sb


def _reference(A, B, t, batch_size, max_scale=1.0):
    sa = jnp.clip(1.0 - A / (t + 1.0), -max_scale, max_scale)
    sb = jnp.clip(B / (t + 1.0), -max_scale, max_scale)
    sa = jnp.broadcast_to(sa[None], (batch_size,) + A.shape)
    sb = jnp.broadcast_to(sb[None], (batch_size,) + B.shape)
    return sa, sb


if __name__ == "__main__":
    key = jax.random.PRNGKey(0)
    k1, k2 = jax.random.split(key)
    M, N = 16, 128
    batch_size = 2
    t = 3.0
    max_scale = 1.0

    A = jax.random.normal(k1, (M, N), dtype=jnp.float32) * 5.0
    B = jax.random.normal(k2, (M, N), dtype=jnp.float32) * 5.0

    sa, sb = scaling_factor_compute(A, B, t, batch_size, max_scale)
    jax.block_until_ready((sa, sb))

    ref_sa, ref_sb = _reference(A, B, t, batch_size, max_scale)
    assert sa.shape == (batch_size, M, N) and sb.shape == (batch_size, M, N)
    assert jnp.allclose(sa, ref_sa, atol=1e-6)
    assert jnp.allclose(sb, ref_sb, atol=1e-6)

    print("KERNEL_OK")
</pallas_src>

<mosaic_0001>
module attributes {stable_mosaic.version = 11 : i64} {
  func.func @kernel(%arg0: i32, %arg1: i32, %arg2: memref<1x1xf32, #tpu.memory_space<smem>>, %arg3: memref<16x128xf32, #tpu.memory_space<vmem>>, %arg4: memref<16x128xf32, #tpu.memory_space<vmem>>, %arg5: memref<2x16x128xf32, #tpu.memory_space<vmem>>, %arg6: memref<2x16x128xf32, #tpu.memory_space<vmem>>) attributes {dimension_semantics = [#tpu.dimension_semantics<parallel>, #tpu.dimension_semantics<parallel>], iteration_bounds = array<i64: 1, 1>, scalar_prefetch = 0 : i64, scratch_operands = 0 : i64, tpu.core_type = #tpu.core_type<tc>, window_params = [{transform_indices = @transform_0, window_bounds = array<i64: 1, 1>}, {transform_indices = @transform_1, window_bounds = array<i64: 16, 128>}, {transform_indices = @transform_2, window_bounds = array<i64: 16, 128>}, {transform_indices = @transform_3, window_bounds = array<i64: 2, 16, 128>}, {transform_indices = @transform_4, window_bounds = array<i64: 2, 16, 128>}]} {
    %c0 = arith.constant 0 : index
    %c0_0 = arith.constant 0 : index
    %0 = memref.load %arg2[%c0, %c0_0] : memref<1x1xf32, #tpu.memory_space<smem>>
    %cst = arith.constant 1.000000e+00 : f32
    %1 = arith.addf %0, %cst : f32
    %c0_1 = arith.constant 0 : index
    %c0_2 = arith.constant 0 : index
    %2 = vector.load %arg3[%c0_1, %c0_2] : memref<16x128xf32, #tpu.memory_space<vmem>>, vector<16x128xf32>
    %3 = vector.broadcast %1 : f32 to vector<16x128xf32>
    %4 = arith.divf %2, %3 : vector<16x128xf32>
    %cst_3 = arith.constant 1.000000e+00 : f32
    %5 = vector.broadcast %cst_3 : f32 to vector<16x128xf32>
    %6 = arith.subf %5, %4 : vector<16x128xf32>
    %cst_4 = arith.constant -1.000000e+00 : f32
    %cst_5 = arith.constant 1.000000e+00 : f32
    %7 = vector.broadcast %cst_4 : f32 to vector<16x128xf32>
    %8 = arith.maximumf %7, %6 : vector<16x128xf32>
    %9 = vector.broadcast %cst_5 : f32 to vector<16x128xf32>
    %10 = arith.minimumf %9, %8 : vector<16x128xf32>
    %c0_6 = arith.constant 0 : index
    %c0_7 = arith.constant 0 : index
    %11 = vector.load %arg4[%c0_6, %c0_7] : memref<16x128xf32, #tpu.memory_space<vmem>>, vector<16x128xf32>
    %12 = vector.broadcast %1 : f32 to vector<16x128xf32>
    %13 = arith.divf %11, %12 : vector<16x128xf32>
    %cst_8 = arith.constant -1.000000e+00 : f32
    %cst_9 = arith.constant 1.000000e+00 : f32
    %14 = vector.broadcast %cst_8 : f32 to vector<16x128xf32>
    %15 = arith.maximumf %14, %13 : vector<16x128xf32>
    %16 = vector.broadcast %cst_9 : f32 to vector<16x128xf32>
    %17 = arith.minimumf %16, %15 : vector<16x128xf32>
    %18 = vector.shape_cast %10 : vector<16x128xf32> to vector<1x16x128xf32>
    %19 = vector.shape_cast %18 : vector<1x16x128xf32> to vector<1x16x128xf32>
    %20 = vector.broadcast %19 : vector<1x16x128xf32> to vector<2x16x128xf32>
    %c0_10 = arith.constant 0 : index
    %c0_11 = arith.constant 0 : index
    %c0_12 = arith.constant 0 : index
    %21 = vector.load %arg5[%c0_10, %c0_11, %c0_12] : memref<2x16x128xf32, #tpu.memory_space<vmem>>, vector<2x16x128xf32>
    tpu.vector_store %arg5[%c0_10, %c0_11, %c0_12], %20 {strides = array<i32>} : memref<2x16x128xf32, #tpu.memory_space<vmem>>, vector<2x16x128xf32>,
    %22 = vector.shape_cast %17 : vector<16x128xf32> to vector<1x16x128xf32>
    %23 = vector.shape_cast %22 : vector<1x16x128xf32> to vector<1x16x128xf32>
    %24 = vector.broadcast %23 : vector<1x16x128xf32> to vector<2x16x128xf32>
    %c0_13 = arith.constant 0 : index
    %c0_14 = arith.constant 0 : index
    %c0_15 = arith.constant 0 : index
    %25 = vector.load %arg6[%c0_13, %c0_14, %c0_15] : memref<2x16x128xf32, #tpu.memory_space<vmem>>, vector<2x16x128xf32>
    tpu.vector_store %arg6[%c0_13, %c0_14, %c0_15], %24 {strides = array<i32>} : memref<2x16x128xf32, #tpu.memory_space<vmem>>, vector<2x16x128xf32>,
    return
  }
  func.func @transform_0(%arg0: i32, %arg1: i32) -> (i32, i32) {
    %c0_i32 = arith.constant 0 : i32
    %c0_i32_0 = arith.constant 0 : i32
    %c0_i32_1 = arith.constant 0 : i32
    return %c0_i32, %c0_i32_0 : i32, i32
  }
  func.func @transform_1(%arg0: i32, %arg1: i32) -> (i32, i32) {
    %c0_i32 = arith.constant 0 : i32
    %c0_i32_0 = arith.constant 0 : i32
    return %arg0, %c0_i32 : i32, i32
  }
  func.func @transform_2(%arg0: i32, %arg1: i32) -> (i32, i32) {
    %c0_i32 = arith.constant 0 : i32
    %c0_i32_0 = arith.constant 0 : i32
    return %arg0, %c0_i32 : i32, i32
  }
  func.func @transform_3(%arg0: i32, %arg1: i32) -> (i32, i32, i32) {
    %c0_i32 = arith.constant 0 : i32
    %c0_i32_0 = arith.constant 0 : i32
    return %arg1, %arg0, %c0_i32 : i32, i32, i32
  }
  func.func @transform_4(%arg0: i32, %arg1: i32) -> (i32, i32, i32) {
    %c0_i32 = arith.constant 0 : i32
    %c0_i32_0 = arith.constant 0 : i32
    return %arg1, %arg0, %c0_i32 : i32, i32, i32
  }
}

</mosaic_0001>

<llo_original>
// kernel: tpu_custom_call.1
$region0: #{tpu_custom_call.1}
  #allocation0 [shape = 'u32[]', space=smem, size = 0x4, offset = 0x4, fixed_abs, tag = 'smem constant byte address 0x4 - core index']
  #allocation1 [shape = 'u32[144,128]{1,0:T(1,128)}', space=vmem, size = 0x12000, scoped, tag = 'internal scratch']
  #allocation2 [shape = 'f32[1,1]{1,0:T(1,128)S(6)}', space=smem, size = 0x200, scoped, tag = 'scoped memory for tpu_custom_call.1']
  %s0 = inlined_call_operand.<no memory space> [shape: f32[1,1], index: 0, kind: input, shape index: {}]
  %s1 = inlined_call_operand.hbm [shape: f32[16,128], index: 1, kind: input, shape index: {}]
  %s2 = inlined_call_operand.hbm [shape: f32[16,128], index: 2, kind: input, shape index: {}]
  %s3 = inlined_call_operand.hbm [shape: f32[2,16,128], index: 3, kind: output, shape index: {0}]
  %s4 = inlined_call_operand.hbm [shape: f32[2,16,128], index: 4, kind: output, shape index: {1}]
  %5 = xla_tuple %s3, %s4
  %s6 = sld [smem:[#allocation0]]
  $region38: #{tpu_custom_call.1} parent=0
    _
  %s8 = ssub.s32 1, %s6
  %s9 = scalar_select 0, %s8, %s6
  %10 = sst [smem:[#allocation2]] %s0
  $region1: #{tpu_custom_call.1} parent=0
    #allocation3 [shape = 'u8[8192]{0}', space=vmem, size = 0x2000, scoped, tag = 'input window, operand 1, single buffered']
    #allocation4 [shape = 's32[1]{0}', space=sflag, size = 0x4, scoped, tag = 'scoped memory for tpu_custom_call.1']
    #allocation5 [shape = 's32[1]{0}', space=sflag, size = 0x4, scoped, tag = 'scoped memory for tpu_custom_call.1']
    #allocation6 [shape = 'u8[8192]{0}', space=vmem, size = 0x2000, scoped, tag = 'input window, operand 2, single buffered']
    #allocation7 [shape = 's32[1]{0}', space=sflag, size = 0x4, scoped, tag = 'scoped memory for tpu_custom_call.1']
    #allocation8 [shape = 'u8[16384]{0}', space=vmem, size = 0x4000, scoped, tag = 'output window, operand 0, single buffered']
    #allocation9 [shape = 'u8[16384]{0}', space=vmem, size = 0x4000, scoped, tag = 'output window, operand 1, single buffered']
    #allocation10 [shape = 's32[1]{0}', space=sflag, size = 0x4, scoped, tag = 'scoped memory for tpu_custom_call.1']
    %11 = vsyncpa [#allocation4], 0
    %12 = vsyncpa [#allocation7], 0
    %13 = vsyncpa [#allocation5], 0
    %14 = vsyncpa [#allocation10], 0
    // Predicated region
    $region2: #{tpu_custom_call.1} parent=1 // pred_check
      _
    $region3: #{tpu_custom_call.1} parent=1 // pred_check_branch
      %16 = sbr.rel (0) target = $region5
    $region4: #{tpu_custom_call.1} parent=1 // pred_region
      _
    $region5: #{tpu_custom_call.1} parent=1 // pred_fallthru
      _
    // Predicated region
    $region6: #{tpu_custom_call.1} parent=1 // pred_check
      _
    $region7: #{tpu_custom_call.1} parent=1 // pred_check_branch
      %18 = sbr.rel (0) target = $region9
    $region8: #{tpu_custom_call.1} parent=1 // pred_region
      %s20 = ssub.s32 256, 256
      %21 = vsyncadd [#allocation4], %s20
      %s22 = sshll.u32 [#allocation3], 4
      %s23 = int_to_ptr.vmem [resolvable:$true] %s22
      %28 = dma.hbm_to_vmem [thread:$0]  %s1, 256, %s23, [#allocation4], 128, 128, 8
    $region9: #{tpu_custom_call.1} parent=1 // pred_fallthru
      _
    // Predicated region
    $region10: #{tpu_custom_call.1} parent=1 // pred_check
      _
    $region11: #{tpu_custom_call.1} parent=1 // pred_check_branch
      %30 = sbr.rel (0) target = $region13
    $region12: #{tpu_custom_call.1} parent=1 // pred_region
      %s32 = ssub.s32 256, 256
      %33 = vsyncadd [#allocation7], %s32
      %s34 = sshll.u32 [#allocation6], 4
      %s35 = int_to_ptr.vmem [resolvable:$true] %s34
      %40 = dma.hbm_to_vmem [thread:$0]  %s2, 256, %s35, [#allocation7], 128, 128, 8
    $region13: #{tpu_custom_call.1} parent=1 // pred_fallthru
      _
    // Predicated region
    $region14: #{tpu_custom_call.1} parent=1 // pred_check
      _
    $region15: #{tpu_custom_call.1} parent=1 // pred_check_branch
      %42 = sbr.rel (0) target = $region17
    $region16: #{tpu_custom_call.1} parent=1 // pred_region
      %43 = dma.done [#allocation4], 256
    $region17: #{tpu_custom_call.1} parent=1 // pred_fallthru
      _
    // Predicated region
    $region18: #{tpu_custom_call.1} parent=1 // pred_check
      _
    $region19: #{tpu_custom_call.1} parent=1 // pred_check_branch
      %45 = sbr.rel (0) target = $region21
    $region20: #{tpu_custom_call.1} parent=1 // pred_region
      %46 = dma.done [#allocation7], 256
    $region21: #{tpu_custom_call.1} parent=1 // pred_fallthru
      _
    %s47 = sld [smem:[#allocation2]]
    %s48 = sadd.f32 %s47, 1.0
    %v49 = vld [vmem:[#allocation3] sm:$0xff]
    %v50 = vld [vmem:[#allocation3 + $0x8] sm:$0xff]
    %v51 = vstv %s48
    %v52 = vrcp.pop %v51
    %v53 = vmul.f32 %v49, %v52
    %v54 = vmul.f32 %v50, %v52
    %v55 = vsub.f32 1.0, %v53
    %v56 = vsub.f32 1.0, %v54
    %v57 = vmax.f32 %v55, -1.0
    %v58 = vmax.f32 %v56, -1.0
    %v59 = vmin.f32 %v57, 1.0
    %v60 = vmin.f32 %v58, 1.0
    %v61 = vld [vmem:[#allocation6] sm:$0xff]
    %v62 = vld [vmem:[#allocation6 + $0x8] sm:$0xff]
    %v63 = vmul.f32 %v61, %v52
    %v64 = vmul.f32 %v62, %v52
    %v65 = vmax.f32 %v63, -1.0
    %v66 = vmax.f32 %v64, -1.0
    %v67 = vmin.f32 %v65, 1.0
    %v68 = vmin.f32 %v66, 1.0
    %69 = vst [vmem:[#allocation8] sm:$0xff] %v59
    %70 = vst [vmem:[#allocation8 + $0x8] sm:$0xff] %v60
    %71 = vst [vmem:[#allocation8 + $0x10] sm:$0xff] %v59
    %72 = vst [vmem:[#allocation8 + $0x18] sm:$0xff] %v60
    %73 = vst [vmem:[#allocation9] sm:$0xff] %v67
    %74 = vst [vmem:[#allocation9 + $0x8] sm:$0xff] %v68
    %75 = vst [vmem:[#allocation9 + $0x10] sm:$0xff] %v67
    %76 = vst [vmem:[#allocation9 + $0x18] sm:$0xff] %v68
    // Predicated region
    $region22: #{tpu_custom_call.1} parent=1 // pred_check
      _
    $region23: #{tpu_custom_call.1} parent=1 // pred_check_branch
      %78 = sbr.rel (0) target = $region25
    $region24: #{tpu_custom_call.1} parent=1 // pred_region
      %s80 = ssub.s32 512, 512
      %81 = vsyncadd [#allocation5], %s80
      %s82 = sshll.u32 [#allocation8], 4
      %s83 = int_to_ptr.vmem [resolvable:$true] %s82
      %88 = dma.vmem_to_hbm [thread:$0]  %s83, 512, %s3, [#allocation5], 128, 128, 8
    $region25: #{tpu_custom_call.1} parent=1 // pred_fallthru
      _
    // Predicated region
    $region26: #{tpu_custom_call.1} parent=1 // pred_check
      _
    $region27: #{tpu_custom_call.1} parent=1 // pred_check_branch
      %90 = sbr.rel (0) target = $region29
    $region28: #{tpu_custom_call.1} parent=1 // pred_region
      %s92 = ssub.s32 512, 512
      %93 = vsyncadd [#allocation10], %s92
      %s94 = sshll.u32 [#allocation9], 4
      %s95 = int_to_ptr.vmem [resolvable:$true] %s94
      %100 = dma.vmem_to_hbm [thread:$0]  %s95, 512, %s4, [#allocation10], 128, 128, 8
    $region29: #{tpu_custom_call.1} parent=1 // pred_fallthru
      _
    // Predicated region
    $region30: #{tpu_custom_call.1} parent=1 // pred_check
      _
    $region31: #{tpu_custom_call.1} parent=1 // pred_check_branch
      %102 = sbr.rel (0) target = $region33
    $region32: #{tpu_custom_call.1} parent=1 // pred_region
      %103 = dma.done [#allocation5], 512
    $region33: #{tpu_custom_call.1} parent=1 // pred_fallthru
      _
    // Predicated region
    $region34: #{tpu_custom_call.1} parent=1 // pred_check
      _
    $region35: #{tpu_custom_call.1} parent=1 // pred_check_branch
      %105 = sbr.rel (0) target = $region37
    $region36: #{tpu_custom_call.1} parent=1 // pred_region
      %106 = dma.done [#allocation10], 512
    $region37: #{tpu_custom_call.1} parent=1 // pred_fallthru
      _
    %107 = vsyncpa [#allocation4], 1
    %108 = vsyncpa [#allocation7], 1
    %109 = vsyncpa [#allocation5], 1
    %110 = vsyncpa [#allocation10], 1

</llo_original>
